<compile_context>
chip_gen: v5e
topology: v5e:2x2
jax: 0.10.0
libtpu: 0.0.40
codegen_flags: <defaults>
</compile_context>

<pallas_src>
import jax
import jax.numpy as jnp
from jax import lax
from jax.experimental import pallas as pl
from jax.experimental.pallas import tpu as pltpu


_ROW_CHUNK = 16  # rows (of 128 lanes) processed per inner fori_loop step


def rt_kernel(x_ref, w1_ref, b1_ref, w2_ref, b2_ref, omega_ref, bias_ref, y_ref):
    # x_ref: [2, sub, 128] VMEM tile -- feature f is x_ref[f], a lane-dense
    # [sub, 128] stack of f32 vregs (batch on lanes+sublanes).
    sub = y_ref.shape[0]          # static
    H = b1_ref.shape[0]           # static (8)
    n_chunks = sub // _ROW_CHUNK  # static; wrapper guarantees divisibility

    # Hoist all 42 scalar SMEM reads out of the row loop.  Fold the 0.5 factors
    # of sigmoid(a) = 0.5*tanh(a/2) + 0.5 and of omega into the scalars so the
    # per-chunk tail is ~5 VALU ops + 2 EUP transcendentals.
    w10 = [w1_ref[0, j] for j in range(H)]
    w11 = [w1_ref[1, j] for j in range(H)]
    b1s = [b1_ref[j] for j in range(H)]
    w20 = [w2_ref[j, 0] for j in range(H)]
    w21h = [0.5 * w2_ref[j, 1] for j in range(H)]
    b20 = b2_ref[0]
    b21h = 0.5 * b2_ref[1]
    om_h = 0.5 * omega_ref[0]
    bias = bias_ref[0]

    def body(c, carry):
        r0 = pl.multiple_of(c * _ROW_CHUNK, _ROW_CHUNK)
        x0 = x_ref[0, pl.ds(r0, _ROW_CHUNK), :]
        x1 = x_ref[1, pl.ds(r0, _ROW_CHUNK), :]

        # fc1 + ReLU + fc2 as scalar-broadcast FMAs on the VPU (MXU skipped:
        # K=2 / N=2).  fc2 biases are folded into the accumulator init.
        a0 = jnp.full_like(x0, b20)      # fc2 output 0
        a1h = jnp.full_like(x0, b21h)    # 0.5 * fc2 output 1
        for j in range(H):               # statically unrolled (H = 8)
            h = jnp.maximum(w10[j] * x0 + w11[j] * x1 + b1s[j], 0.0)
            a0 = a0 + w20[j] * h
            a1h = a1h + w21h[j] * h

        # y = omega / (1 - sigmoid(a0)) * sigmoid(a1) + bias
        #   = (1 + exp(a0)) * (omega * sigmoid(a1)) + bias     [1/(1-sig(a)) == 1+e^a]
        # with omega * sigmoid(a1) = om_h * (1 + tanh(a1/2)).
        # exp/tanh go to the EUP; no reciprocal/divide on the VALU and no
        # (1 - sigmoid) cancellation.  Behavioural note: the reference overflows
        # to inf once a0 >~ 17 (sigmoid saturates to exactly 1); this form stays
        # finite up to a0 ~ 88 -- identical result everywhere else.
        y_ref[pl.ds(r0, _ROW_CHUNK), :] = (
            (1.0 + jnp.exp(a0)) * (om_h * (1.0 + jnp.tanh(a1h))) + bias)
        return carry

    lax.fori_loop(0, n_chunks, body, 0, unroll=2)


def rt_model_forward(x, params, *, max_block_rows=4096):
    """x: [B, 2] float32.  Returns y: [B] float32.

    max_block_rows is the per-grid-step batch tile in 128-lane rows
    (4096 rows = 524288 batch elements; ~12 MiB double-buffered VMEM).
    """
    w1, b1, w2, b2, omega, bias = (
        params["w1"], params["b1"], params["w2"], params["b2"],
        params["omega"], params["bias"],
    )
    B = x.shape[0]

    # --- adaptive tiling: pad only to the block granularity actually used ---
    rows = pl.cdiv(B, 128)               # 128-lane rows of batch
    g = pl.cdiv(rows, max_block_rows)    # grid steps
    if g == 1 and rows >= 4 * _ROW_CHUNK:
        g = 2                            # feed both TensorCores on v7x
    sub = pl.cdiv(rows, g)
    sub = ((sub + 2 * _ROW_CHUNK - 1) // (2 * _ROW_CHUNK)) * (2 * _ROW_CHUNK)
    R = g * sub                          # total rows after padding
    Bp = R * 128

    xp = x.astype(jnp.float32)
    if Bp != B:
        xp = jnp.pad(xp, ((0, Bp - B), (0, 0)))

    # Lane-dense layout plumbing: [Bp, 2] -> [2, Bp] -> [2, R, 128]
    # (see TODO(synk) at the top about moving this relayout upstream).
    xt = xp.T.reshape(2, R, 128)

    smem = pl.BlockSpec(memory_space=pltpu.MemorySpace.SMEM)
    cost = pl.CostEstimate(flops=80 * Bp, transcendentals=2 * Bp,
                           bytes_accessed=12 * Bp)

    y = pl.pallas_call(
        rt_kernel,
        out_shape=jax.ShapeDtypeStruct((R, 128), jnp.float32),
        grid=(g,),
        in_specs=[
            # x: batch-tiled, full (8,128) f32 vreg tiles per feature
            pl.BlockSpec((2, sub, 128), lambda i: (0, i, 0)),
            # weights / biases / omega / bias: tiny scalar tables in SMEM
            smem,  # w1 [2, H]
            smem,  # b1 [H]
            smem,  # w2 [H, 2]
            smem,  # b2 [2]
            smem,  # omega [1]
            smem,  # bias [1]
        ],
        # lane-dense output slab (no last-dim-1 masked stores)
        out_specs=pl.BlockSpec((sub, 128), lambda i: (i, 0)),
        compiler_params=pltpu.CompilerParams(
            dimension_semantics=("parallel",),
            vmem_limit_bytes=32 * 1024 * 1024,
        ),
        cost_estimate=cost,
    )(xt, w1, b1, w2, b2, omega, bias)

    return y.reshape(Bp)[:B]


def init_params(key, hidden_size=8):
    """Deterministic init matching RTModel.__init__ parameter shapes.

    fc1: Linear(2 -> hidden), fc2: Linear(hidden -> 2), omega=[1.0], bias=[0.0].
    Linear weights are stored transposed as [in, out] so y = x @ W + b.
    """
    k1, k2, k3, k4 = jax.random.split(key, 4)
    lim1 = 1.0 / jnp.sqrt(2.0)
    lim2 = 1.0 / jnp.sqrt(float(hidden_size))
    return {
        "w1": jax.random.uniform(k1, (2, hidden_size), jnp.float32, -lim1, lim1),
        "b1": jax.random.uniform(k2, (hidden_size,), jnp.float32, -lim1, lim1),
        "w2": jax.random.uniform(k3, (hidden_size, 2), jnp.float32, -lim2, lim2),
        "b2": jax.random.uniform(k4, (2,), jnp.float32, -lim2, lim2),
        "omega": jnp.array([1.0], dtype=jnp.float32),
        "bias": jnp.array([0.0], dtype=jnp.float32),
    }


def rt_model_ref(x, params):
    """Pure-JAX reference of the PyTorch forward."""
    h = jnp.maximum(x @ params["w1"] + params["b1"], 0.0)
    o = jax.nn.sigmoid(h @ params["w2"] + params["b2"])
    return params["omega"][0] / (1.0 - o[:, 0]) * o[:, 1] + params["bias"][0]


if __name__ == "__main__":
    key = jax.random.PRNGKey(0)
    kx, kp = jax.random.split(key)

    B, H = 8192, 8   # rows=64 -> grid of 2 blocks (32 rows each): both TCs on v7x
    x = jax.random.normal(kx, (B, 2), dtype=jnp.float32)
    params = init_params(kp, hidden_size=H)

    y = jax.block_until_ready(rt_model_forward(x, params))

    y_ref = rt_model_ref(x, params)
    assert y.shape == (B,)
    # 1e-4 tolerance: the 1/(1 - sigmoid) factor amplifies f32 rounding and
    # formulation differences (1 + e^a identity, tanh-form sigmoid) slightly.
    assert jnp.allclose(y, y_ref, atol=1e-4, rtol=1e-4), (
        float(jnp.max(jnp.abs(y - y_ref))))

    print("KERNEL_OK")
</pallas_src>

<mosaic_0001>
module attributes {stable_mosaic.version = 11 : i64} {
  func.func @rt_kernel(%arg0: i32, %arg1: memref<2x32x128xf32, #tpu.memory_space<vmem>>, %arg2: memref<2x8xf32, #tpu.memory_space<smem>>, %arg3: memref<8xf32, #tpu.memory_space<smem>>, %arg4: memref<8x2xf32, #tpu.memory_space<smem>>, %arg5: memref<2xf32, #tpu.memory_space<smem>>, %arg6: memref<1xf32, #tpu.memory_space<smem>>, %arg7: memref<1xf32, #tpu.memory_space<smem>>, %arg8: memref<32x128xf32, #tpu.memory_space<vmem>>) attributes {dimension_semantics = [#tpu.dimension_semantics<parallel>], iteration_bounds = array<i64: 2>, scalar_prefetch = 0 : i64, scratch_operands = 0 : i64, tpu.core_type = #tpu.core_type<tc>, window_params = [{transform_indices = @transform_0, window_bounds = array<i64: 2, 32, 128>}, {transform_indices = @transform_1, window_bounds = array<i64: 2, 8>}, {transform_indices = @transform_2, window_bounds = array<i64: 8>}, {transform_indices = @transform_3, window_bounds = array<i64: 8, 2>}, {transform_indices = @transform_4, window_bounds = array<i64: 2>}, {transform_indices = @transform_5, window_bounds = array<i64: 1>}, {transform_indices = @transform_6, window_bounds = array<i64: 1>}, {transform_indices = @transform_7, window_bounds = array<i64: 32, 128>}]} {
    %c0 = arith.constant 0 : index
    %c0_0 = arith.constant 0 : index
    %0 = memref.load %arg2[%c0, %c0_0] : memref<2x8xf32, #tpu.memory_space<smem>>
    %c0_1 = arith.constant 0 : index
    %c1 = arith.constant 1 : index
    %1 = memref.load %arg2[%c0_1, %c1] : memref<2x8xf32, #tpu.memory_space<smem>>
    %c0_2 = arith.constant 0 : index
    %c2 = arith.constant 2 : index
    %2 = memref.load %arg2[%c0_2, %c2] : memref<2x8xf32, #tpu.memory_space<smem>>
    %c0_3 = arith.constant 0 : index
    %c3 = arith.constant 3 : index
    %3 = memref.load %arg2[%c0_3, %c3] : memref<2x8xf32, #tpu.memory_space<smem>>
    %c0_4 = arith.constant 0 : index
    %c4 = arith.constant 4 : index
    %4 = memref.load %arg2[%c0_4, %c4] : memref<2x8xf32, #tpu.memory_space<smem>>
    %c0_5 = arith.constant 0 : index
    %c5 = arith.constant 5 : index
    %5 = memref.load %arg2[%c0_5, %c5] : memref<2x8xf32, #tpu.memory_space<smem>>
    %c0_6 = arith.constant 0 : index
    %c6 = arith.constant 6 : index
    %6 = memref.load %arg2[%c0_6, %c6] : memref<2x8xf32, #tpu.memory_space<smem>>
    %c0_7 = arith.constant 0 : index
    %c7 = arith.constant 7 : index
    %7 = memref.load %arg2[%c0_7, %c7] : memref<2x8xf32, #tpu.memory_space<smem>>
    %c1_8 = arith.constant 1 : index
    %c0_9 = arith.constant 0 : index
    %8 = memref.load %arg2[%c1_8, %c0_9] : memref<2x8xf32, #tpu.memory_space<smem>>
    %c1_10 = arith.constant 1 : index
    %c1_11 = arith.constant 1 : index
    %9 = memref.load %arg2[%c1_10, %c1_11] : memref<2x8xf32, #tpu.memory_space<smem>>
    %c1_12 = arith.constant 1 : index
    %c2_13 = arith.constant 2 : index
    %10 = memref.load %arg2[%c1_12, %c2_13] : memref<2x8xf32, #tpu.memory_space<smem>>
    %c1_14 = arith.constant 1 : index
    %c3_15 = arith.constant 3 : index
    %11 = memref.load %arg2[%c1_14, %c3_15] : memref<2x8xf32, #tpu.memory_space<smem>>
    %c1_16 = arith.constant 1 : index
    %c4_17 = arith.constant 4 : index
    %12 = memref.load %arg2[%c1_16, %c4_17] : memref<2x8xf32, #tpu.memory_space<smem>>
    %c1_18 = arith.constant 1 : index
    %c5_19 = arith.constant 5 : index
    %13 = memref.load %arg2[%c1_18, %c5_19] : memref<2x8xf32, #tpu.memory_space<smem>>
    %c1_20 = arith.constant 1 : index
    %c6_21 = arith.constant 6 : index
    %14 = memref.load %arg2[%c1_20, %c6_21] : memref<2x8xf32, #tpu.memory_space<smem>>
    %c1_22 = arith.constant 1 : index
    %c7_23 = arith.constant 7 : index
    %15 = memref.load %arg2[%c1_22, %c7_23] : memref<2x8xf32, #tpu.memory_space<smem>>
    %c0_24 = arith.constant 0 : index
    %16 = memref.load %arg3[%c0_24] : memref<8xf32, #tpu.memory_space<smem>>
    %c1_25 = arith.constant 1 : index
    %17 = memref.load %arg3[%c1_25] : memref<8xf32, #tpu.memory_space<smem>>
    %c2_26 = arith.constant 2 : index
    %18 = memref.load %arg3[%c2_26] : memref<8xf32, #tpu.memory_space<smem>>
    %c3_27 = arith.constant 3 : index
    %19 = memref.load %arg3[%c3_27] : memref<8xf32, #tpu.memory_space<smem>>
    %c4_28 = arith.constant 4 : index
    %20 = memref.load %arg3[%c4_28] : memref<8xf32, #tpu.memory_space<smem>>
    %c5_29 = arith.constant 5 : index
    %21 = memref.load %arg3[%c5_29] : memref<8xf32, #tpu.memory_space<smem>>
    %c6_30 = arith.constant 6 : index
    %22 = memref.load %arg3[%c6_30] : memref<8xf32, #tpu.memory_space<smem>>
    %c7_31 = arith.constant 7 : index
    %23 = memref.load %arg3[%c7_31] : memref<8xf32, #tpu.memory_space<smem>>
    %c0_32 = arith.constant 0 : index
    %c0_33 = arith.constant 0 : index
    %24 = memref.load %arg4[%c0_32, %c0_33] : memref<8x2xf32, #tpu.memory_space<smem>>
    %c1_34 = arith.constant 1 : index
    %c0_35 = arith.constant 0 : index
    %25 = memref.load %arg4[%c1_34, %c0_35] : memref<8x2xf32, #tpu.memory_space<smem>>
    %c2_36 = arith.constant 2 : index
    %c0_37 = arith.constant 0 : index
    %26 = memref.load %arg4[%c2_36, %c0_37] : memref<8x2xf32, #tpu.memory_space<smem>>
    %c3_38 = arith.constant 3 : index
    %c0_39 = arith.constant 0 : index
    %27 = memref.load %arg4[%c3_38, %c0_39] : memref<8x2xf32, #tpu.memory_space<smem>>
    %c4_40 = arith.constant 4 : index
    %c0_41 = arith.constant 0 : index
    %28 = memref.load %arg4[%c4_40, %c0_41] : memref<8x2xf32, #tpu.memory_space<smem>>
    %c5_42 = arith.constant 5 : index
    %c0_43 = arith.constant 0 : index
    %29 = memref.load %arg4[%c5_42, %c0_43] : memref<8x2xf32, #tpu.memory_space<smem>>
    %c6_44 = arith.constant 6 : index
    %c0_45 = arith.constant 0 : index
    %30 = memref.load %arg4[%c6_44, %c0_45] : memref<8x2xf32, #tpu.memory_space<smem>>
    %c7_46 = arith.constant 7 : index
    %c0_47 = arith.constant 0 : index
    %31 = memref.load %arg4[%c7_46, %c0_47] : memref<8x2xf32, #tpu.memory_space<smem>>
    %c0_48 = arith.constant 0 : index
    %c1_49 = arith.constant 1 : index
    %32 = memref.load %arg4[%c0_48, %c1_49] : memref<8x2xf32, #tpu.memory_space<smem>>
    %cst = arith.constant 5.000000e-01 : f32
    %33 = arith.mulf %cst, %32 : f32
    %c1_50 = arith.constant 1 : index
    %c1_51 = arith.constant 1 : index
    %34 = memref.load %arg4[%c1_50, %c1_51] : memref<8x2xf32, #tpu.memory_space<smem>>
    %cst_52 = arith.constant 5.000000e-01 : f32
    %35 = arith.mulf %cst_52, %34 : f32
    %c2_53 = arith.constant 2 : index
    %c1_54 = arith.constant 1 : index
    %36 = memref.load %arg4[%c2_53, %c1_54] : memref<8x2xf32, #tpu.memory_space<smem>>
    %cst_55 = arith.constant 5.000000e-01 : f32
    %37 = arith.mulf %cst_55, %36 : f32
    %c3_56 = arith.constant 3 : index
    %c1_57 = arith.constant 1 : index
    %38 = memref.load %arg4[%c3_56, %c1_57] : memref<8x2xf32, #tpu.memory_space<smem>>
    %cst_58 = arith.constant 5.000000e-01 : f32
    %39 = arith.mulf %cst_58, %38 : f32
    %c4_59 = arith.constant 4 : index
    %c1_60 = arith.constant 1 : index
    %40 = memref.load %arg4[%c4_59, %c1_60] : memref<8x2xf32, #tpu.memory_space<smem>>
    %cst_61 = arith.constant 5.000000e-01 : f32
    %41 = arith.mulf %cst_61, %40 : f32
    %c5_62 = arith.constant 5 : index
    %c1_63 = arith.constant 1 : index
    %42 = memref.load %arg4[%c5_62, %c1_63] : memref<8x2xf32, #tpu.memory_space<smem>>
    %cst_64 = arith.constant 5.000000e-01 : f32
    %43 = arith.mulf %cst_64, %42 : f32
    %c6_65 = arith.constant 6 : index
    %c1_66 = arith.constant 1 : index
    %44 = memref.load %arg4[%c6_65, %c1_66] : memref<8x2xf32, #tpu.memory_space<smem>>
    %cst_67 = arith.constant 5.000000e-01 : f32
    %45 = arith.mulf %cst_67, %44 : f32
    %c7_68 = arith.constant 7 : index
    %c1_69 = arith.constant 1 : index
    %46 = memref.load %arg4[%c7_68, %c1_69] : memref<8x2xf32, #tpu.memory_space<smem>>
    %cst_70 = arith.constant 5.000000e-01 : f32
    %47 = arith.mulf %cst_70, %46 : f32
    %c0_71 = arith.constant 0 : index
    %48 = memref.load %arg5[%c0_71] : memref<2xf32, #tpu.memory_space<smem>>
    %c1_72 = arith.constant 1 : index
    %49 = memref.load %arg5[%c1_72] : memref<2xf32, #tpu.memory_space<smem>>
    %cst_73 = arith.constant 5.000000e-01 : f32
    %50 = arith.mulf %cst_73, %49 : f32
    %c0_74 = arith.constant 0 : index
    %51 = memref.load %arg6[%c0_74] : memref<1xf32, #tpu.memory_space<smem>>
    %cst_75 = arith.constant 5.000000e-01 : f32
    %52 = arith.mulf %cst_75, %51 : f32
    %c0_76 = arith.constant 0 : index
    %53 = memref.load %arg7[%c0_76] : memref<1xf32, #tpu.memory_space<smem>>
    %c0_i32 = arith.constant 0 : i32
    %c16_i32 = arith.constant 16 : i32
    %54 = arith.muli %c0_i32, %c16_i32 : i32
    %55 = tpu.assume_multiple %54, 16 : i32
    %c0_77 = arith.constant 0 : index
    %56 = arith.index_cast %55 : i32 to index
    %c0_78 = arith.constant 0 : index
    %57 = vector.load %arg1[%c0_77, %56, %c0_78] : memref<2x32x128xf32, #tpu.memory_space<vmem>>, vector<1x16x128xf32>
    %58 = vector.shape_cast %57 : vector<1x16x128xf32> to vector<16x128xf32>
    %c1_79 = arith.constant 1 : index
    %59 = arith.index_cast %55 : i32 to index
    %c0_80 = arith.constant 0 : index
    %60 = vector.load %arg1[%c1_79, %59, %c0_80] : memref<2x32x128xf32, #tpu.memory_space<vmem>>, vector<1x16x128xf32>
    %61 = vector.shape_cast %60 : vector<1x16x128xf32> to vector<16x128xf32>
    %62 = vector.broadcast %48 : f32 to vector<16x128xf32>
    %63 = vector.broadcast %50 : f32 to vector<16x128xf32>
    %64 = vector.broadcast %0 : f32 to vector<16x128xf32>
    %65 = arith.mulf %64, %58 : vector<16x128xf32>
    %66 = vector.broadcast %8 : f32 to vector<16x128xf32>
    %67 = arith.mulf %66, %61 : vector<16x128xf32>
    %68 = arith.addf %65, %67 : vector<16x128xf32>
    %69 = vector.broadcast %16 : f32 to vector<16x128xf32>
    %70 = arith.addf %68, %69 : vector<16x128xf32>
    %cst_81 = arith.constant 0.000000e+00 : f32
    %71 = vector.broadcast %cst_81 : f32 to vector<16x128xf32>
    %72 = arith.maximumf %70, %71 : vector<16x128xf32>
    %73 = vector.broadcast %24 : f32 to vector<16x128xf32>
    %74 = arith.mulf %73, %72 : vector<16x128xf32>
    %75 = arith.addf %62, %74 : vector<16x128xf32>
    %76 = vector.broadcast %33 : f32 to vector<16x128xf32>
    %77 = arith.mulf %76, %72 : vector<16x128xf32>
    %78 = arith.addf %63, %77 : vector<16x128xf32>
    %79 = vector.broadcast %1 : f32 to vector<16x128xf32>
    %80 = arith.mulf %79, %58 : vector<16x128xf32>
    %81 = vector.broadcast %9 : f32 to vector<16x128xf32>
    %82 = arith.mulf %81, %61 : vector<16x128xf32>
    %83 = arith.addf %80, %82 : vector<16x128xf32>
    %84 = vector.broadcast %17 : f32 to vector<16x128xf32>
    %85 = arith.addf %83, %84 : vector<16x128xf32>
    %cst_82 = arith.constant 0.000000e+00 : f32
    %86 = vector.broadcast %cst_82 : f32 to vector<16x128xf32>
    %87 = arith.maximumf %85, %86 : vector<16x128xf32>
    %88 = vector.broadcast %25 : f32 to vector<16x128xf32>
    %89 = arith.mulf %88, %87 : vector<16x128xf32>
    %90 = arith.addf %75, %89 : vector<16x128xf32>
    %91 = vector.broadcast %35 : f32 to vector<16x128xf32>
    %92 = arith.mulf %91, %87 : vector<16x128xf32>
    %93 = arith.addf %78, %92 : vector<16x128xf32>
    %94 = vector.broadcast %2 : f32 to vector<16x128xf32>
    %95 = arith.mulf %94, %58 : vector<16x128xf32>
    %96 = vector.broadcast %10 : f32 to vector<16x128xf32>
    %97 = arith.mulf %96, %61 : vector<16x128xf32>
    %98 = arith.addf %95, %97 : vector<16x128xf32>
    %99 = vector.broadcast %18 : f32 to vector<16x128xf32>
    %100 = arith.addf %98, %99 : vector<16x128xf32>
    %cst_83 = arith.constant 0.000000e+00 : f32
    %101 = vector.broadcast %cst_83 : f32 to vector<16x128xf32>
    %102 = arith.maximumf %100, %101 : vector<16x128xf32>
    %103 = vector.broadcast %26 : f32 to vector<16x128xf32>
    %104 = arith.mulf %103, %102 : vector<16x128xf32>
    %105 = arith.addf %90, %104 : vector<16x128xf32>
    %106 = vector.broadcast %37 : f32 to vector<16x128xf32>
    %107 = arith.mulf %106, %102 : vector<16x128xf32>
    %108 = arith.addf %93, %107 : vector<16x128xf32>
    %109 = vector.broadcast %3 : f32 to vector<16x128xf32>
    %110 = arith.mulf %109, %58 : vector<16x128xf32>
    %111 = vector.broadcast %11 : f32 to vector<16x128xf32>
    %112 = arith.mulf %111, %61 : vector<16x128xf32>
    %113 = arith.addf %110, %112 : vector<16x128xf32>
    %114 = vector.broadcast %19 : f32 to vector<16x128xf32>
    %115 = arith.addf %113, %114 : vector<16x128xf32>
    %cst_84 = arith.constant 0.000000e+00 : f32
    %116 = vector.broadcast %cst_84 : f32 to vector<16x128xf32>
    %117 = arith.maximumf %115, %116 : vector<16x128xf32>
    %118 = vector.broadcast %27 : f32 to vector<16x128xf32>
    %119 = arith.mulf %118, %117 : vector<16x128xf32>
    %120 = arith.addf %105, %119 : vector<16x128xf32>
    %121 = vector.broadcast %39 : f32 to vector<16x128xf32>
    %122 = arith.mulf %121, %117 : vector<16x128xf32>
    %123 = arith.addf %108, %122 : vector<16x128xf32>
    %124 = vector.broadcast %4 : f32 to vector<16x128xf32>
    %125 = arith.mulf %124, %58 : vector<16x128xf32>
    %126 = vector.broadcast %12 : f32 to vector<16x128xf32>
    %127 = arith.mulf %126, %61 : vector<16x128xf32>
    %128 = arith.addf %125, %127 : vector<16x128xf32>
    %129 = vector.broadcast %20 : f32 to vector<16x128xf32>
    %130 = arith.addf %128, %129 : vector<16x128xf32>
    %cst_85 = arith.constant 0.000000e+00 : f32
    %131 = vector.broadcast %cst_85 : f32 to vector<16x128xf32>
    %132 = arith.maximumf %130, %131 : vector<16x128xf32>
    %133 = vector.broadcast %28 : f32 to vector<16x128xf32>
    %134 = arith.mulf %133, %132 : vector<16x128xf32>
    %135 = arith.addf %120, %134 : vector<16x128xf32>
    %136 = vector.broadcast %41 : f32 to vector<16x128xf32>
    %137 = arith.mulf %136, %132 : vector<16x128xf32>
    %138 = arith.addf %123, %137 : vector<16x128xf32>
    %139 = vector.broadcast %5 : f32 to vector<16x128xf32>
    %140 = arith.mulf %139, %58 : vector<16x128xf32>
    %141 = vector.broadcast %13 : f32 to vector<16x128xf32>
    %142 = arith.mulf %141, %61 : vector<16x128xf32>
    %143 = arith.addf %140, %142 : vector<16x128xf32>
    %144 = vector.broadcast %21 : f32 to vector<16x128xf32>
    %145 = arith.addf %143, %144 : vector<16x128xf32>
    %cst_86 = arith.constant 0.000000e+00 : f32
    %146 = vector.broadcast %cst_86 : f32 to vector<16x128xf32>
    %147 = arith.maximumf %145, %146 : vector<16x128xf32>
    %148 = vector.broadcast %29 : f32 to vector<16x128xf32>
    %149 = arith.mulf %148, %147 : vector<16x128xf32>
    %150 = arith.addf %135, %149 : vector<16x128xf32>
    %151 = vector.broadcast %43 : f32 to vector<16x128xf32>
    %152 = arith.mulf %151, %147 : vector<16x128xf32>
    %153 = arith.addf %138, %152 : vector<16x128xf32>
    %154 = vector.broadcast %6 : f32 to vector<16x128xf32>
    %155 = arith.mulf %154, %58 : vector<16x128xf32>
    %156 = vector.broadcast %14 : f32 to vector<16x128xf32>
    %157 = arith.mulf %156, %61 : vector<16x128xf32>
    %158 = arith.addf %155, %157 : vector<16x128xf32>
    %159 = vector.broadcast %22 : f32 to vector<16x128xf32>
    %160 = arith.addf %158, %159 : vector<16x128xf32>
    %cst_87 = arith.constant 0.000000e+00 : f32
    %161 = vector.broadcast %cst_87 : f32 to vector<16x128xf32>
    %162 = arith.maximumf %160, %161 : vector<16x128xf32>
    %163 = vector.broadcast %30 : f32 to vector<16x128xf32>
    %164 = arith.mulf %163, %162 : vector<16x128xf32>
    %165 = arith.addf %150, %164 : vector<16x128xf32>
    %166 = vector.broadcast %45 : f32 to vector<16x128xf32>
    %167 = arith.mulf %166, %162 : vector<16x128xf32>
    %168 = arith.addf %153, %167 : vector<16x128xf32>
    %169 = vector.broadcast %7 : f32 to vector<16x128xf32>
    %170 = arith.mulf %169, %58 : vector<16x128xf32>
    %171 = vector.broadcast %15 : f32 to vector<16x128xf32>
    %172 = arith.mulf %171, %61 : vector<16x128xf32>
    %173 = arith.addf %170, %172 : vector<16x128xf32>
    %174 = vector.broadcast %23 : f32 to vector<16x128xf32>
    %175 = arith.addf %173, %174 : vector<16x128xf32>
    %cst_88 = arith.constant 0.000000e+00 : f32
    %176 = vector.broadcast %cst_88 : f32 to vector<16x128xf32>
    %177 = arith.maximumf %175, %176 : vector<16x128xf32>
    %178 = vector.broadcast %31 : f32 to vector<16x128xf32>
    %179 = arith.mulf %178, %177 : vector<16x128xf32>
    %180 = arith.addf %165, %179 : vector<16x128xf32>
    %181 = vector.broadcast %47 : f32 to vector<16x128xf32>
    %182 = arith.mulf %181, %177 : vector<16x128xf32>
    %183 = arith.addf %168, %182 : vector<16x128xf32>
    %184 = math.exp %180 : vector<16x128xf32>
    %cst_89 = arith.constant 1.000000e+00 : f32
    %185 = vector.broadcast %cst_89 : f32 to vector<16x128xf32>
    %186 = arith.addf %185, %184 : vector<16x128xf32>
    %187 = math.tanh %183 : vector<16x128xf32>
    %cst_90 = arith.constant 1.000000e+00 : f32
    %188 = vector.broadcast %cst_90 : f32 to vector<16x128xf32>
    %189 = arith.addf %188, %187 : vector<16x128xf32>
    %190 = vector.broadcast %52 : f32 to vector<16x128xf32>
    %191 = arith.mulf %190, %189 : vector<16x128xf32>
    %192 = arith.mulf %186, %191 : vector<16x128xf32>
    %193 = vector.broadcast %53 : f32 to vector<16x128xf32>
    %194 = arith.addf %192, %193 : vector<16x128xf32>
    %195 = arith.index_cast %55 : i32 to index
    %c0_91 = arith.constant 0 : index
    %196 = vector.load %arg8[%195, %c0_91] : memref<32x128xf32, #tpu.memory_space<vmem>>, vector<16x128xf32>
    tpu.vector_store %arg8[%195, %c0_91], %194 {strides = array<i32>} : memref<32x128xf32, #tpu.memory_space<vmem>>, vector<16x128xf32>,
    %c1_i32 = arith.constant 1 : i32
    %c16_i32_92 = arith.constant 16 : i32
    %197 = arith.muli %c1_i32, %c16_i32_92 : i32
    %198 = tpu.assume_multiple %197, 16 : i32
    %c0_93 = arith.constant 0 : index
    %199 = arith.index_cast %198 : i32 to index
    %c0_94 = arith.constant 0 : index
    %200 = vector.load %arg1[%c0_93, %199, %c0_94] : memref<2x32x128xf32, #tpu.memory_space<vmem>>, vector<1x16x128xf32>
    %201 = vector.shape_cast %200 : vector<1x16x128xf32> to vector<16x128xf32>
    %c1_95 = arith.constant 1 : index
    %202 = arith.index_cast %198 : i32 to index
    %c0_96 = arith.constant 0 : index
    %203 = vector.load %arg1[%c1_95, %202, %c0_96] : memref<2x32x128xf32, #tpu.memory_space<vmem>>, vector<1x16x128xf32>
    %204 = vector.shape_cast %203 : vector<1x16x128xf32> to vector<16x128xf32>
    %205 = vector.broadcast %48 : f32 to vector<16x128xf32>
    %206 = vector.broadcast %50 : f32 to vector<16x128xf32>
    %207 = vector.broadcast %0 : f32 to vector<16x128xf32>
    %208 = arith.mulf %207, %201 : vector<16x128xf32>
    %209 = vector.broadcast %8 : f32 to vector<16x128xf32>
    %210 = arith.mulf %209, %204 : vector<16x128xf32>
    %211 = arith.addf %208, %210 : vector<16x128xf32>
    %212 = vector.broadcast %16 : f32 to vector<16x128xf32>
    %213 = arith.addf %211, %212 : vector<16x128xf32>
    %cst_97 = arith.constant 0.000000e+00 : f32
    %214 = vector.broadcast %cst_97 : f32 to vector<16x128xf32>
    %215 = arith.maximumf %213, %214 : vector<16x128xf32>
    %216 = vector.broadcast %24 : f32 to vector<16x128xf32>
    %217 = arith.mulf %216, %215 : vector<16x128xf32>
    %218 = arith.addf %205, %217 : vector<16x128xf32>
    %219 = vector.broadcast %33 : f32 to vector<16x128xf32>
    %220 = arith.mulf %219, %215 : vector<16x128xf32>
    %221 = arith.addf %206, %220 : vector<16x128xf32>
    %222 = vector.broadcast %1 : f32 to vector<16x128xf32>
    %223 = arith.mulf %222, %201 : vector<16x128xf32>
    %224 = vector.broadcast %9 : f32 to vector<16x128xf32>
    %225 = arith.mulf %224, %204 : vector<16x128xf32>
    %226 = arith.addf %223, %225 : vector<16x128xf32>
    %227 = vector.broadcast %17 : f32 to vector<16x128xf32>
    %228 = arith.addf %226, %227 : vector<16x128xf32>
    %cst_98 = arith.constant 0.000000e+00 : f32
    %229 = vector.broadcast %cst_98 : f32 to vector<16x128xf32>
    %230 = arith.maximumf %228, %229 : vector<16x128xf32>
    %231 = vector.broadcast %25 : f32 to vector<16x128xf32>
    %232 = arith.mulf %231, %230 : vector<16x128xf32>
    %233 = arith.addf %218, %232 : vector<16x128xf32>
    %234 = vector.broadcast %35 : f32 to vector<16x128xf32>
    %235 = arith.mulf %234, %230 : vector<16x128xf32>
    %236 = arith.addf %221, %235 : vector<16x128xf32>
    %237 = vector.broadcast %2 : f32 to vector<16x128xf32>
    %238 = arith.mulf %237, %201 : vector<16x128xf32>
    %239 = vector.broadcast %10 : f32 to vector<16x128xf32>
    %240 = arith.mulf %239, %204 : vector<16x128xf32>
    %241 = arith.addf %238, %240 : vector<16x128xf32>
    %242 = vector.broadcast %18 : f32 to vector<16x128xf32>
    %243 = arith.addf %241, %242 : vector<16x128xf32>
    %cst_99 = arith.constant 0.000000e+00 : f32
    %244 = vector.broadcast %cst_99 : f32 to vector<16x128xf32>
    %245 = arith.maximumf %243, %244 : vector<16x128xf32>
    %246 = vector.broadcast %26 : f32 to vector<16x128xf32>
    %247 = arith.mulf %246, %245 : vector<16x128xf32>
    %248 = arith.addf %233, %247 : vector<16x128xf32>
    %249 = vector.broadcast %37 : f32 to vector<16x128xf32>
    %250 = arith.mulf %249, %245 : vector<16x128xf32>
    %251 = arith.addf %236, %250 : vector<16x128xf32>
    %252 = vector.broadcast %3 : f32 to vector<16x128xf32>
    %253 = arith.mulf %252, %201 : vector<16x128xf32>
    %254 = vector.broadcast %11 : f32 to vector<16x128xf32>
    %255 = arith.mulf %254, %204 : vector<16x128xf32>
    %256 = arith.addf %253, %255 : vector<16x128xf32>
    %257 = vector.broadcast %19 : f32 to vector<16x128xf32>
    %258 = arith.addf %256, %257 : vector<16x128xf32>
    %cst_100 = arith.constant 0.000000e+00 : f32
    %259 = vector.broadcast %cst_100 : f32 to vector<16x128xf32>
    %260 = arith.maximumf %258, %259 : vector<16x128xf32>
    %261 = vector.broadcast %27 : f32 to vector<16x128xf32>
    %262 = arith.mulf %261, %260 : vector<16x128xf32>
    %263 = arith.addf %248, %262 : vector<16x128xf32>
    %264 = vector.broadcast %39 : f32 to vector<16x128xf32>
    %265 = arith.mulf %264, %260 : vector<16x128xf32>
    %266 = arith.addf %251, %265 : vector<16x128xf32>
    %267 = vector.broadcast %4 : f32 to vector<16x128xf32>
    %268 = arith.mulf %267, %201 : vector<16x128xf32>
    %269 = vector.broadcast %12 : f32 to vector<16x128xf32>
    %270 = arith.mulf %269, %204 : vector<16x128xf32>
    %271 = arith.addf %268, %270 : vector<16x128xf32>
    %272 = vector.broadcast %20 : f32 to vector<16x128xf32>
    %273 = arith.addf %271, %272 : vector<16x128xf32>
    %cst_101 = arith.constant 0.000000e+00 : f32
    %274 = vector.broadcast %cst_101 : f32 to vector<16x128xf32>
    %275 = arith.maximumf %273, %274 : vector<16x128xf32>
    %276 = vector.broadcast %28 : f32 to vector<16x128xf32>
    %277 = arith.mulf %276, %275 : vector<16x128xf32>
    %278 = arith.addf %263, %277 : vector<16x128xf32>
    %279 = vector.broadcast %41 : f32 to vector<16x128xf32>
    %280 = arith.mulf %279, %275 : vector<16x128xf32>
    %281 = arith.addf %266, %280 : vector<16x128xf32>
    %282 = vector.broadcast %5 : f32 to vector<16x128xf32>
    %283 = arith.mulf %282, %201 : vector<16x128xf32>
    %284 = vector.broadcast %13 : f32 to vector<16x128xf32>
    %285 = arith.mulf %284, %204 : vector<16x128xf32>
    %286 = arith.addf %283, %285 : vector<16x128xf32>
    %287 = vector.broadcast %21 : f32 to vector<16x128xf32>
    %288 = arith.addf %286, %287 : vector<16x128xf32>
    %cst_102 = arith.constant 0.000000e+00 : f32
    %289 = vector.broadcast %cst_102 : f32 to vector<16x128xf32>
    %290 = arith.maximumf %288, %289 : vector<16x128xf32>
    %291 = vector.broadcast %29 : f32 to vector<16x128xf32>
    %292 = arith.mulf %291, %290 : vector<16x128xf32>
    %293 = arith.addf %278, %292 : vector<16x128xf32>
    %294 = vector.broadcast %43 : f32 to vector<16x128xf32>
    %295 = arith.mulf %294, %290 : vector<16x128xf32>
    %296 = arith.addf %281, %295 : vector<16x128xf32>
    %297 = vector.broadcast %6 : f32 to vector<16x128xf32>
    %298 = arith.mulf %297, %201 : vector<16x128xf32>
    %299 = vector.broadcast %14 : f32 to vector<16x128xf32>
    %300 = arith.mulf %299, %204 : vector<16x128xf32>
    %301 = arith.addf %298, %300 : vector<16x128xf32>
    %302 = vector.broadcast %22 : f32 to vector<16x128xf32>
    %303 = arith.addf %301, %302 : vector<16x128xf32>
    %cst_103 = arith.constant 0.000000e+00 : f32
    %304 = vector.broadcast %cst_103 : f32 to vector<16x128xf32>
    %305 = arith.maximumf %303, %304 : vector<16x128xf32>
    %306 = vector.broadcast %30 : f32 to vector<16x128xf32>
    %307 = arith.mulf %306, %305 : vector<16x128xf32>
    %308 = arith.addf %293, %307 : vector<16x128xf32>
    %309 = vector.broadcast %45 : f32 to vector<16x128xf32>
    %310 = arith.mulf %309, %305 : vector<16x128xf32>
    %311 = arith.addf %296, %310 : vector<16x128xf32>
    %312 = vector.broadcast %7 : f32 to vector<16x128xf32>
    %313 = arith.mulf %312, %201 : vector<16x128xf32>
    %314 = vector.broadcast %15 : f32 to vector<16x128xf32>
    %315 = arith.mulf %314, %204 : vector<16x128xf32>
    %316 = arith.addf %313, %315 : vector<16x128xf32>
    %317 = vector.broadcast %23 : f32 to vector<16x128xf32>
    %318 = arith.addf %316, %317 : vector<16x128xf32>
    %cst_104 = arith.constant 0.000000e+00 : f32
    %319 = vector.broadcast %cst_104 : f32 to vector<16x128xf32>
    %320 = arith.maximumf %318, %319 : vector<16x128xf32>
    %321 = vector.broadcast %31 : f32 to vector<16x128xf32>
    %322 = arith.mulf %321, %320 : vector<16x128xf32>
    %323 = arith.addf %308, %322 : vector<16x128xf32>
    %324 = vector.broadcast %47 : f32 to vector<16x128xf32>
    %325 = arith.mulf %324, %320 : vector<16x128xf32>
    %326 = arith.addf %311, %325 : vector<16x128xf32>
    %327 = math.exp %323 : vector<16x128xf32>
    %cst_105 = arith.constant 1.000000e+00 : f32
    %328 = vector.broadcast %cst_105 : f32 to vector<16x128xf32>
    %329 = arith.addf %328, %327 : vector<16x128xf32>
    %330 = math.tanh %326 : vector<16x128xf32>
    %cst_106 = arith.constant 1.000000e+00 : f32
    %331 = vector.broadcast %cst_106 : f32 to vector<16x128xf32>
    %332 = arith.addf %331, %330 : vector<16x128xf32>
    %333 = vector.broadcast %52 : f32 to vector<16x128xf32>
    %334 = arith.mulf %333, %332 : vector<16x128xf32>
    %335 = arith.mulf %329, %334 : vector<16x128xf32>
    %336 = vector.broadcast %53 : f32 to vector<16x128xf32>
    %337 = arith.addf %335, %336 : vector<16x128xf32>
    %338 = arith.index_cast %198 : i32 to index
    %c0_107 = arith.constant 0 : index
    %339 = vector.load %arg8[%338, %c0_107] : memref<32x128xf32, #tpu.memory_space<vmem>>, vector<16x128xf32>
    tpu.vector_store %arg8[%338, %c0_107], %337 {strides = array<i32>} : memref<32x128xf32, #tpu.memory_space<vmem>>, vector<16x128xf32>,
    %c2_i32 = arith.constant 2 : i32
    return
  }
  func.func @transform_0(%arg0: i32) -> (i32, i32, i32) {
    %c0_i32 = arith.constant 0 : i32
    %c0_i32_0 = arith.constant 0 : i32
    %c0_i32_1 = arith.constant 0 : i32
    return %c0_i32, %arg0, %c0_i32_0 : i32, i32, i32
  }
  func.func @transform_1(%arg0: i32) -> (i32, i32) {
    %c0_i32 = arith.constant 0 : i32
    %c0_i32_0 = arith.constant 0 : i32
    %c0_i32_1 = arith.constant 0 : i32
    return %c0_i32, %c0_i32_0 : i32, i32
  }
  func.func @transform_2(%arg0: i32) -> i32 {
    %c0_i32 = arith.constant 0 : i32
    %c0_i32_0 = arith.constant 0 : i32
    return %c0_i32 : i32
  }
  func.func @transform_3(%arg0: i32) -> (i32, i32) {
    %c0_i32 = arith.constant 0 : i32
    %c0_i32_0 = arith.constant 0 : i32
    %c0_i32_1 = arith.constant 0 : i32
    return %c0_i32, %c0_i32_0 : i32, i32
  }
  func.func @transform_4(%arg0: i32) -> i32 {
    %c0_i32 = arith.constant 0 : i32
    %c0_i32_0 = arith.constant 0 : i32
    return %c0_i32 : i32
  }
  func.func @transform_5(%arg0: i32) -> i32 {
    %c0_i32 = arith.constant 0 : i32
    %c0_i32_0 = arith.constant 0 : i32
    return %c0_i32 : i32
  }
  func.func @transform_6(%arg0: i32) -> i32 {
    %c0_i32 = arith.constant 0 : i32
    %c0_i32_0 = arith.constant 0 : i32
    return %c0_i32 : i32
  }
  func.func @transform_7(%arg0: i32) -> (i32, i32) {
    %c0_i32 = arith.constant 0 : i32
    %c0_i32_0 = arith.constant 0 : i32
    return %arg0, %c0_i32 : i32, i32
  }
}

</mosaic_0001>

<llo_original>
// kernel: tpu_custom_call.1
$region0: #{tpu_custom_call.1}
  #allocation0 [shape = 'u32[]', space=smem, size = 0x4, offset = 0x4, fixed_abs, tag = 'smem constant byte address 0x4 - core index']
  #allocation1 [shape = 'u32[72,128]{1,0:T(1,128)}', space=vmem, size = 0x9000, scoped, tag = 'internal scratch']
  #allocation2 [shape = 'f32[1]{0:T(128)S(6)}', space=smem, size = 0x200, scoped, tag = 'scoped memory for tpu_custom_call.1']
  #allocation3 [shape = 'f32[1]{0:T(128)S(6)}', space=smem, size = 0x200, scoped, tag = 'scoped memory for tpu_custom_call.1']
  #allocation15 [shape = 's32[]', space=sflag, size = 0x4, offset = 0, fixed_abs, tag = 'sflag constant byte address 0x0 - dummy sync flag']
  %s0 = inlined_call_operand.hbm [shape: f32[2,64,128], index: 0, kind: input, shape index: {}]
  %s1 = inlined_call_operand.vmem [shape: f32[2,8], index: 1, kind: input, shape index: {}]
  %s2 = inlined_call_operand.vmem [shape: f32[8], index: 2, kind: input, shape index: {}]
  %s3 = inlined_call_operand.vmem [shape: f32[8,2], index: 3, kind: input, shape index: {}]
  %s4 = inlined_call_operand.vmem [shape: f32[2], index: 4, kind: input, shape index: {}]
  %s5 = inlined_call_operand.<no memory space> [shape: f32[1], index: 5, kind: input, shape index: {}]
  %s6 = inlined_call_operand.<no memory space> [shape: f32[1], index: 6, kind: input, shape index: {}]
  %s7 = inlined_call_operand.hbm [shape: f32[64,128], index: 7, kind: output, shape index: {}]
  %s8 = sld [smem:[#allocation0]]
  $region81: #{tpu_custom_call.1} parent=0
    _
  %s10 = ssub.s32 1, %s8
  %s11 = scalar_select 0, %s10, %s8
  %12 = sst [smem:[#allocation2]] %s5
  %13 = sst [smem:[#allocation3]] %s6
  $region1: #{tpu_custom_call.1} parent=0
    #allocation4 [shape = 'u8[65536]{0}', space=vmem, size = 0x10000, scoped, tag = 'input window, operand 0']
    #allocation5 [shape = 's32[2]{0}', space=sflag, size = 0x8, scoped, tag = 'scoped memory for tpu_custom_call.1']
    #allocation6 [shape = 's32[2]{0}', space=sflag, size = 0x8, scoped, tag = 'scoped memory for tpu_custom_call.1']
    #allocation7 [shape = 's32[2]{0}', space=sflag, size = 0x8, scoped, tag = 'scoped memory for tpu_custom_call.1']
    #allocation8 [shape = 'u8[1024]{0}', space=smem, size = 0x400, scoped, tag = 'input window, operand 1, single buffered']
    #allocation9 [shape = 'u8[512]{0}', space=smem, size = 0x200, scoped, tag = 'input window, operand 2, single buffered']
    #allocation10 [shape = 's32[1]{0}', space=sflag, size = 0x4, scoped, tag = 'scoped memory for tpu_custom_call.1']
    #allocation11 [shape = 'u8[4096]{0}', space=smem, size = 0x1000, scoped, tag = 'input window, operand 3, single buffered']
    #allocation12 [shape = 'u8[512]{0}', space=smem, size = 0x200, scoped, tag = 'input window, operand 4, single buffered']
    #allocation13 [shape = 's32[1]{0}', space=sflag, size = 0x4, scoped, tag = 'scoped memory for tpu_custom_call.1']
    #allocation14 [shape = 'u8[32768]{0}', space=vmem, size = 0x8000, scoped, tag = 'output window, operand 0']
    %14 = vsyncpa [#allocation5], 0
    %s15 = scalar_lea.sflag [#allocation5], 1
    %16 = vsyncpa %s15, 0
    %17 = vsyncpa [#allocation7], 0
    %18 = vsyncpa [#allocation10], 0
    %19 = vsyncpa [#allocation13], 0
    %20 = vsyncpa [#allocation6], 0
    %s21 = scalar_lea.sflag [#allocation6], 1
    %22 = vsyncpa %s21, 0
    loop: start=0, step=1, limit=4
    $region2: #{tpu_custom_call.1} parent=1 // loop_pre_header
      _
    $region3: #{tpu_custom_call.1} parent=1 // loop_header
      %s24 = sphi 0, %s28
      %p25 = scmp.ge.s32.totalorder %s24, 4
      %s34 = sphi 0, %s36
      %s37 = sphi 0, %s34
      %s38 = sphi 0, %s37
      %s54 = sphi 0, %s38
      %s58 = sphi 0, %s58
      %s60 = sphi 0, %s58
      %s61 = sphi 0, %s60
      %s75 = sphi 0, %s61
      %s79 = sphi 0, %s79
      %s81 = sphi 0, %s79
      %s82 = sphi 0, %s81
      %s96 = sphi 0, %s82
      %s100 = sphi 0, %s100
      %s102 = sphi 0, %s100
      %s103 = sphi 0, %s102
      %s117 = sphi 0, %s103
      %s121 = sphi 0, %s121
      %s123 = sphi 0, %s121
      %s124 = sphi 0, %s123
      %s138 = sphi 0, %s124
      %s142 = sphi 0, %s142
      %s144 = sphi 0, %s142
      %s145 = sphi 0, %s144
      %s159 = sphi 0, %s145
      %s163 = sphi 0, %s163
      %s165 = sphi 0, %s163
      %s166 = sphi 0, %s165
      %s180 = sphi 0, %s166
      %s186 = sphi 0, %s188
      %s189 = sphi 0, %s186
      %s190 = sphi 0, %s189
      %s206 = sphi 0, %s190
    $region4: #{tpu_custom_call.1} parent=1 // loop_header_branch
      %27 = sbr.rel (%p25) target = $region8
    $region5: #{tpu_custom_call.1} parent=1 // loop_body
      %s29 = ssub.s32 %s24, 1
      %s30 = ssub.s32 %s24, 2
      %s31 = sadd.s32 %s24, 1
      %s32 = ssub.s32 %s24, %s31
      %p33 = scmp.eq.s32.totalorder %s32, 0
      %s35 = sadd.s32 %s34, 1
      %s36 = scalar_select %p33, %s34, %s35
      %p39 = pneg %p33
      %p40 = scmp.eq.s32.totalorder %s24, 1
      %p41 = por %p39, %p40
      %p42 = scmp.ne.s32.totalorder %s34, %s37
      %p43 = scmp.eq.s32.totalorder %s24, 0
      %p44 = por %p42, %p43
      %p45 = scmp.ne.s32.totalorder %s34, %s37
      %p46 = scmp.eq.s32.totalorder %s29, 1
      %p47 = por %p45, %p46
      %p48 = scmp.ne.s32.totalorder %s37, %s38
      %p49 = scmp.eq.s32.totalorder %s29, 0
      %p50 = por %p48, %p49
      %p51 = scmp.ne.s32.totalorder %s37, %s38
      %p52 = scmp.eq.s32.totalorder %s30, 1
      %p53 = por %p51, %p52
      %p55 = scmp.ne.s32.totalorder %s38, %s54
      %p56 = scmp.eq.s32.totalorder %s30, 0
      %p57 = por %p55, %p56
      %s59 = sadd.s32 %s58, 1
      %p62 = scmp.eq.s32.totalorder %s24, 1
      %p63 = scmp.ne.s32.totalorder %s58, %s60
      %p64 = scmp.eq.s32.totalorder %s24, 0
      %p65 = por %p63, %p64
      %p66 = scmp.ne.s32.totalorder %s58, %s60
      %p67 = scmp.eq.s32.totalorder %s29, 1
      %p68 = por %p66, %p67
      %p69 = scmp.ne.s32.totalorder %s60, %s61
      %p70 = scmp.eq.s32.totalorder %s29, 0
      %p71 = por %p69, %p70
      %p72 = scmp.ne.s32.totalorder %s60, %s61
      %p73 = scmp.eq.s32.totalorder %s30, 1
      %p74 = por %p72, %p73
      %p76 = scmp.ne.s32.totalorder %s61, %s75
      %p77 = scmp.eq.s32.totalorder %s30, 0
      %p78 = por %p76, %p77
      %s80 = sadd.s32 %s79, 1
      %p83 = scmp.eq.s32.totalorder %s24, 1
      %p84 = scmp.ne.s32.totalorder %s79, %s81
      %p85 = scmp.eq.s32.totalorder %s24, 0
      %p86 = por %p84, %p85
      %p87 = scmp.ne.s32.totalorder %s79, %s81
      %p88 = scmp.eq.s32.totalorder %s29, 1
      %p89 = por %p87, %p88
      %p90 = scmp.ne.s32.totalorder %s81, %s82
      %p91 = scmp.eq.s32.totalorder %s29, 0
      %p92 = por %p90, %p91
      %p93 = scmp.ne.s32.totalorder %s81, %s82
      %p94 = scmp.eq.s32.totalorder %s30, 1
      %p95 = por %p93, %p94
      %p97 = scmp.ne.s32.totalorder %s82, %s96
      %p98 = scmp.eq.s32.totalorder %s30, 0
      %p99 = por %p97, %p98
      %s101 = sadd.s32 %s100, 1
      %p104 = scmp.eq.s32.totalorder %s24, 1
      %p105 = scmp.ne.s32.totalorder %s100, %s102
      %p106 = scmp.eq.s32.totalorder %s24, 0
      %p107 = por %p105, %p106
      %p108 = scmp.ne.s32.totalorder %s100, %s102
      %p109 = scmp.eq.s32.totalorder %s29, 1
      %p110 = por %p108, %p109
      %p111 = scmp.ne.s32.totalorder %s102, %s103
      %p112 = scmp.eq.s32.totalorder %s29, 0
      %p113 = por %p111, %p112
      %p114 = scmp.ne.s32.totalorder %s102, %s103
      %p115 = scmp.eq.s32.totalorder %s30, 1
      %p116 = por %p114, %p115
      %p118 = scmp.ne.s32.totalorder %s103, %s117
      %p119 = scmp.eq.s32.totalorder %s30, 0
      %p120 = por %p118, %p119
      %s122 = sadd.s32 %s121, 1
      %p125 = scmp.eq.s32.totalorder %s24, 1
      %p126 = scmp.ne.s32.totalorder %s121, %s123
      %p127 = scmp.eq.s32.totalorder %s24, 0
      %p128 = por %p126, %p127
      %p129 = scmp.ne.s32.totalorder %s121, %s123
      %p130 = scmp.eq.s32.totalorder %s29, 1
      %p131 = por %p129, %p130
      %p132 = scmp.ne.s32.totalorder %s123, %s124
      %p133 = scmp.eq.s32.totalorder %s29, 0
      %p134 = por %p132, %p133
      %p135 = scmp.ne.s32.totalorder %s123, %s124
      %p136 = scmp.eq.s32.totalorder %s30, 1
      %p137 = por %p135, %p136
      %p139 = scmp.ne.s32.totalorder %s124, %s138
      %p140 = scmp.eq.s32.totalorder %s30, 0
      %p141 = por %p139, %p140
      %s143 = sadd.s32 %s142, 1
      %p146 = scmp.eq.s32.totalorder %s24, 1
      %p147 = scmp.ne.s32.totalorder %s142, %s144
      %p148 = scmp.eq.s32.totalorder %s24, 0
      %p149 = por %p147, %p148
      %p150 = scmp.ne.s32.totalorder %s142, %s144
      %p151 = scmp.eq.s32.totalorder %s29, 1
      %p152 = por %p150, %p151
      %p153 = scmp.ne.s32.totalorder %s144, %s145
      %p154 = scmp.eq.s32.totalorder %s29, 0
      %p155 = por %p153, %p154
      %p156 = scmp.ne.s32.totalorder %s144, %s145
      %p157 = scmp.eq.s32.totalorder %s30, 1
      %p158 = por %p156, %p157
      %p160 = scmp.ne.s32.totalorder %s145, %s159
      %p161 = scmp.eq.s32.totalorder %s30, 0
      %p162 = por %p160, %p161
      %s164 = sadd.s32 %s163, 1
      %p167 = scmp.eq.s32.totalorder %s24, 1
      %p168 = scmp.ne.s32.totalorder %s163, %s165
      %p169 = scmp.eq.s32.totalorder %s24, 0
      %p170 = por %p168, %p169
      %p171 = scmp.ne.s32.totalorder %s163, %s165
      %p172 = scmp.eq.s32.totalorder %s29, 1
      %p173 = por %p171, %p172
      %p174 = scmp.ne.s32.totalorder %s165, %s166
      %p175 = scmp.eq.s32.totalorder %s29, 0
      %p176 = por %p174, %p175
      %p177 = scmp.ne.s32.totalorder %s165, %s166
      %p178 = scmp.eq.s32.totalorder %s30, 1
      %p179 = por %p177, %p178
      %p181 = scmp.ne.s32.totalorder %s166, %s180
      %p182 = scmp.eq.s32.totalorder %s30, 0
      %p183 = por %p181, %p182
      %s184 = ssub.s32 %s24, %s31
      %p185 = scmp.eq.s32.totalorder %s184, 0
      %s187 = sadd.s32 %s186, 1
      %s188 = scalar_select %p185, %s186, %s187
      %p191 = pneg %p185
      %p192 = scmp.eq.s32.totalorder %s24, 1
      %p193 = por %p191, %p192
      %p194 = scmp.ne.s32.totalorder %s186, %s189
      %p195 = scmp.eq.s32.totalorder %s24, 0
      %p196 = por %p194, %p195
      %p197 = scmp.ne.s32.totalorder %s186, %s189
      %p198 = scmp.eq.s32.totalorder %s29, 1
      %p199 = por %p197, %p198
      %p200 = scmp.ne.s32.totalorder %s189, %s190
      %p201 = scmp.eq.s32.totalorder %s29, 0
      %p202 = por %p200, %p201
      %p203 = scmp.ne.s32.totalorder %s189, %s190
      %p204 = scmp.eq.s32.totalorder %s30, 1
      %p205 = por %p203, %p204
      %p207 = scmp.ne.s32.totalorder %s190, %s206
      %p208 = scmp.eq.s32.totalorder %s30, 0
      %p209 = por %p207, %p208
      %p210 = scmp.le.s32.totalorder 1, %s24
      %p211 = scmp.lt.s32.totalorder %s24, 3
      %p212 = pnand %p210, %p211
      %p213 = pneg %p212
      // Predicated region
      $region9: #{tpu_custom_call.1} parent=5 // pred_check
        _
      $region10: #{tpu_custom_call.1} parent=5 // pred_check_branch
        %215 = sbr.rel (%p212) target = $region12
      $region11: #{tpu_custom_call.1} parent=5 // pred_region
        %s216 = ssub.s32 %s24, 1
        // Predicated region
        $region13: #{tpu_custom_call.1} parent=11 // pred_check
          %p217 = pneg %p71
        $region14: #{tpu_custom_call.1} parent=11 // pred_check_branch
          %219 = sbr.rel (%p217) target = $region16
        $region15: #{tpu_custom_call.1} parent=11 // pred_region
          %221 = vsyncadd [#allocation7], 0
          %s223 = sshll.u32 %s1, 4
          %s224 = int_to_ptr.vmem [resolvable:$true] %s223
          %226 = dma.vmem_to_smem %s224, 32, [#allocation8], [#allocation7]
        $region16: #{tpu_custom_call.1} parent=11 // pred_fallthru
          _
        // Predicated region
        $region17: #{tpu_custom_call.1} parent=11 // pred_check
          %p227 = pneg %p92
        $region18: #{tpu_custom_call.1} parent=11 // pred_check_branch
          %229 = sbr.rel (%p227) target = $region20
        $region19: #{tpu_custom_call.1} parent=11 // pred_region
          %231 = vsyncadd [#allocation10], 0
          %s233 = sshll.u32 %s2, 4
          %s234 = int_to_ptr.vmem [resolvable:$true] %s233
          %236 = dma.vmem_to_smem %s234, 16, [#allocation9], [#allocation10]
        $region20: #{tpu_custom_call.1} parent=11 // pred_fallthru
          _
        // Predicated region
        $region21: #{tpu_custom_call.1} parent=11 // pred_check
          %p237 = pneg %p113
        $region22: #{tpu_custom_call.1} parent=11 // pred_check_branch
          %239 = sbr.rel (%p237) target = $region24
        $region23: #{tpu_custom_call.1} parent=11 // pred_region
          %241 = vsyncadd [#allocation10], 0
          %s243 = sshll.u32 %s3, 4
          %s244 = int_to_ptr.vmem [resolvable:$true] %s243
          %246 = dma.vmem_to_smem %s244, 128, [#allocation11], [#allocation10]
        $region24: #{tpu_custom_call.1} parent=11 // pred_fallthru
          _
        // Predicated region
        $region25: #{tpu_custom_call.1} parent=11 // pred_check
          %p247 = pneg %p134
        $region26: #{tpu_custom_call.1} parent=11 // pred_check_branch
          %249 = sbr.rel (%p247) target = $region28
        $region27: #{tpu_custom_call.1} parent=11 // pred_region
          %251 = vsyncadd [#allocation13], 0
          %s253 = sshll.u32 %s4, 4
          %s254 = int_to_ptr.vmem [resolvable:$true] %s253
          %256 = dma.vmem_to_smem %s254, 16, [#allocation12], [#allocation13]
        $region28: #{tpu_custom_call.1} parent=11 // pred_fallthru
          _
        // Predicated region
        $region29: #{tpu_custom_call.1} parent=11 // pred_check
          %p257 = pneg %p155
        $region30: #{tpu_custom_call.1} parent=11 // pred_check_branch
          %259 = sbr.rel (%p257) target = $region32
        $region31: #{tpu_custom_call.1} parent=11 // pred_region
          _
        $region32: #{tpu_custom_call.1} parent=11 // pred_fallthru
          _
        // Predicated region
        $region33: #{tpu_custom_call.1} parent=11 // pred_check
          %p260 = pneg %p176
        $region34: #{tpu_custom_call.1} parent=11 // pred_check_branch
          %262 = sbr.rel (%p260) target = $region36
        $region35: #{tpu_custom_call.1} parent=11 // pred_region
          _
        $region36: #{tpu_custom_call.1} parent=11 // pred_fallthru
          _
      $region12: #{tpu_custom_call.1} parent=5 // pred_fallthru
        _
      %p263 = scmp.lt.s32.totalorder %s24, 2
      // Predicated region
      $region37: #{tpu_custom_call.1} parent=5 // pred_check
        %p264 = pneg %p263
      $region38: #{tpu_custom_call.1} parent=5 // pred_check_branch
        %266 = sbr.rel (%p264) target = $region40
      $region39: #{tpu_custom_call.1} parent=5 // pred_region
        // Predicated region
        $region41: #{tpu_custom_call.1} parent=39 // pred_check
          %p267 = pneg %p44
        $region42: #{tpu_custom_call.1} parent=39 // pred_check_branch
          %269 = sbr.rel (%p267) target = $region44
        $region43: #{tpu_custom_call.1} parent=39 // pred_region
          #allocation16 [shape = 'u32[6]{0}', space=smem, size = 0x18, scoped, tag = 'DMA stride descriptor']
          %s270 = sand.u32 %s34, 1
          %s271 = scalar_lea.sflag [#allocation5], %s270
          %s272 = sand.u32 %s34, 1
          %s273 = smul.addr %s272, 64
          %s274 = scalar_lea.vmem [#allocation4], %s273
          %s275 = smul.u32 4, %s24
          %277 = vsyncadd %s271, 0
          %s278 = smul.addr %s275, 8
          %s279 = scalar_lea.hbm %s0, %s278
          %s281 = sshll.u32 1, 14
          %s282 = sxor.u32 4294967295, %s281
          %s284 = sld [smem:[#allocation0]]
          %s285 = sadd.s32 2, %s284
          %s287 = sshll.u32 7, 26
          %s288 = sxor.u32 4294967295, %s287
          %s289 = sand.u32 0, %s288
          %s290 = sshll.u32 %s285, 26
          %s291 = sor.u32 %s289, %s290
          %s292 = sshll.u32 %s279, 4
          %s293 = int_to_ptr.hbm [resolvable:$true] %s292
          %s294 = sshll.u32 %s274, 4
          %s295 = int_to_ptr.vmem [resolvable:$true] %s294
          %301 = sst [smem:[#allocation16]] 1024
          %s302 = scalar_lea.smem [#allocation16], 1
          %303 = sst [smem:[%s302]] 512
          %s304 = scalar_lea.smem [#allocation16], 2
          %305 = sst [smem:[%s304]] 4
          %s306 = scalar_lea.smem [#allocation16], 3
          %307 = sst [smem:[%s306]] 128
          %s308 = scalar_lea.smem [#allocation16], 4
          %309 = sst [smem:[%s308]] 128
          %s310 = scalar_lea.smem [#allocation16], 5
          %311 = sst [smem:[%s310]] 8
          %313 = dma.general %s293, 1024, %s295, %s271, [#allocation15], [#allocation16], %s291, 0
        $region44: #{tpu_custom_call.1} parent=39 // pred_fallthru
          _
      $region40: #{tpu_custom_call.1} parent=5 // pred_fallthru
        _
      %p314 = scmp.le.s32.totalorder 1, %s24
      %p315 = scmp.lt.s32.totalorder %s24, 3
      %p316 = pnand %p314, %p315
      %p317 = pneg %p316
      // Predicated region
      $region45: #{tpu_custom_call.1} parent=5 // pred_check
        _
      $region46: #{tpu_custom_call.1} parent=5 // pred_check_branch
        %319 = sbr.rel (%p316) target = $region48
      $region47: #{tpu_custom_call.1} parent=5 // pred_region
        %s320 = ssub.s32 %s24, 1
        %s321 = sand.u32 %s37, 1
        %s322 = scalar_lea.sflag [#allocation5], %s321
        %s323 = sand.u32 %s37, 1
        %s324 = smul.addr %s323, 64
        %s325 = scalar_lea.vmem [#allocation4], %s324
        // Predicated region
        $region49: #{tpu_custom_call.1} parent=47 // pred_check
          %p326 = pneg %p50
        $region50: #{tpu_custom_call.1} parent=47 // pred_check_branch
          %328 = sbr.rel (%p326) target = $region52
        $region51: #{tpu_custom_call.1} parent=47 // pred_region
          %330 = dma.done %s322, 1024
        $region52: #{tpu_custom_call.1} parent=47 // pred_fallthru
          _
        // Predicated region
        $region53: #{tpu_custom_call.1} parent=47 // pred_check
          %p331 = pneg %p71
        $region54: #{tpu_custom_call.1} parent=47 // pred_check_branch
          %333 = sbr.rel (%p331) target = $region56
        $region55: #{tpu_custom_call.1} parent=47 // pred_region
          %335 = dma.done [#allocation7], 32
        $region56: #{tpu_custom_call.1} parent=47 // pred_fallthru
          _
        // Predicated region
        $region57: #{tpu_custom_call.1} parent=47 // pred_check
          %p336 = pneg %p92
        $region58: #{tpu_custom_call.1} parent=47 // pred_check_branch
          %338 = sbr.rel (%p336) target = $region60
        $region59: #{tpu_custom_call.1} parent=47 // pred_region
          %340 = dma.done [#allocation10], 16
        $region60: #{tpu_custom_call.1} parent=47 // pred_fallthru
          _
        // Predicated region
        $region61: #{tpu_custom_call.1} parent=47 // pred_check
          %p341 = pneg %p113
        $region62: #{tpu_custom_call.1} parent=47 // pred_check_branch
          %343 = sbr.rel (%p341) target = $region64
        $region63: #{tpu_custom_call.1} parent=47 // pred_region
          %345 = dma.done [#allocation10], 128
        $region64: #{tpu_custom_call.1} parent=47 // pred_fallthru
          _
        // Predicated region
        $region65: #{tpu_custom_call.1} parent=47 // pred_check
          %p346 = pneg %p134
        $region66: #{tpu_custom_call.1} parent=47 // pred_check_branch
          %348 = sbr.rel (%p346) target = $region68
        $region67: #{tpu_custom_call.1} parent=47 // pred_region
          %350 = dma.done [#allocation13], 16
        $region68: #{tpu_custom_call.1} parent=47 // pred_fallthru
          _
        %351 = sfence
        %s352 = sand.u32 %s37, 1
        %s353 = scalar_lea.sflag [#allocation5], %s352
        %s354 = sand.u32 %s37, 1
        %s355 = smul.addr %s354, 64
        %s356 = scalar_lea.vmem [#allocation4], %s355
        %p357 = pneg %p50
        %p358 = pneg %p47
        %p359 = pneg %p71
        %p360 = pneg %p68
        %p361 = pneg %p92
        %p362 = pneg %p89
        %p363 = pneg %p113
        %p364 = pneg %p110
        %p365 = pneg %p134
        %p366 = pneg %p131
        %p367 = pneg %p155
        %p368 = pneg %p152
        %p369 = pneg %p176
        %p370 = pneg %p173
        %p371 = pneg %p202
        %p372 = pneg %p199
        %s373 = sand.u32 %s189, 1
        %s374 = scalar_lea.sflag [#allocation6], %s373
        %s375 = sand.u32 %s189, 1
        %s376 = smul.addr %s375, 32
        %s377 = scalar_lea.vmem [#allocation14], %s376
        %s378 = smul.u32 4, %s29
        %s379 = smul.u32 4, %s29
        %s380 = sld [smem:[#allocation8]]
        %s381 = sld [smem:[#allocation8 + $0x1]]
        %s382 = sld [smem:[#allocation8 + $0x2]]
        %s383 = sld [smem:[#allocation8 + $0x3]]
        %s384 = sld [smem:[#allocation8 + $0x4]]
        %s385 = sld [smem:[#allocation8 + $0x5]]
        %s386 = sld [smem:[#allocation8 + $0x6]]
        %s387 = sld [smem:[#allocation8 + $0x7]]
        %s388 = sld [smem:[#allocation8 + $0x80]]
        %s389 = sld [smem:[#allocation8 + $0x81]]
        %s390 = sld [smem:[#allocation8 + $0x82]]
        %s391 = sld [smem:[#allocation8 + $0x83]]
        %s392 = sld [smem:[#allocation8 + $0x84]]
        %s393 = sld [smem:[#allocation8 + $0x85]]
        %s394 = sld [smem:[#allocation8 + $0x86]]
        %s395 = sld [smem:[#allocation8 + $0x87]]
        %s396 = sld [smem:[#allocation9]]
        %s397 = sld [smem:[#allocation9 + $0x1]]
        %s398 = sld [smem:[#allocation9 + $0x2]]
        %s399 = sld [smem:[#allocation9 + $0x3]]
        %s400 = sld [smem:[#allocation9 + $0x4]]
        %s401 = sld [smem:[#allocation9 + $0x5]]
        %s402 = sld [smem:[#allocation9 + $0x6]]
        %s403 = sld [smem:[#allocation9 + $0x7]]
        %s404 = sld [smem:[#allocation11]]
        %s405 = sld [smem:[#allocation11 + $0x80]]
        %s406 = sld [smem:[#allocation11 + $0x100]]
        %s407 = sld [smem:[#allocation11 + $0x180]]
        %s408 = sld [smem:[#allocation11 + $0x200]]
        %s409 = sld [smem:[#allocation11 + $0x280]]
        %s410 = sld [smem:[#allocation11 + $0x300]]
        %s411 = sld [smem:[#allocation11 + $0x380]]
        %s412 = sld [smem:[#allocation11 + $0x1]]
        %s413 = smul.f32 %s412, 0.5
        %s414 = sld [smem:[#allocation11 + $0x81]]
        %s415 = smul.f32 %s414, 0.5
        %s416 = sld [smem:[#allocation11 + $0x101]]
        %s417 = smul.f32 %s416, 0.5
        %s418 = sld [smem:[#allocation11 + $0x181]]
        %s419 = smul.f32 %s418, 0.5
        %s420 = sld [smem:[#allocation11 + $0x201]]
        %s421 = smul.f32 %s420, 0.5
        %s422 = sld [smem:[#allocation11 + $0x281]]
        %s423 = smul.f32 %s422, 0.5
        %s424 = sld [smem:[#allocation11 + $0x301]]
        %s425 = smul.f32 %s424, 0.5
        %s426 = sld [smem:[#allocation11 + $0x381]]
        %s427 = smul.f32 %s426, 0.5
        %s428 = sld [smem:[#allocation12]]
        %s429 = sld [smem:[#allocation12 + $0x1]]
        %s430 = smul.f32 %s429, 0.5
        %s431 = sld [smem:[#allocation2]]
        %s432 = smul.f32 %s431, 0.5
        %s433 = sld [smem:[#allocation3]]
        %v434 = vld [vmem:[%s325] sm:$0xff]
        %v435 = vld [vmem:[%s325 + $0x8] sm:$0xff]
        %s436 = sadd.s32 0, 32
        %s437 = scalar_lea.vmem %s325, %s436 [#allocation4]
        %v438 = vld [vmem:[%s437] sm:$0xff]
        %v439 = vld [vmem:[%s437 + $0x8] sm:$0xff]
        %v440 = vstv %s428
        %v441 = vstv %s430
        %v442 = vstv %s380
        %v443 = vmul.f32 %v442, %v434
        %v444 = vmul.f32 %v442, %v435
        %v445 = vstv %s388
        %v446 = vmul.f32 %v445, %v438
        %v447 = vmul.f32 %v445, %v439
        %v448 = vadd.f32 %v443, %v446
        %v449 = vadd.f32 %v444, %v447
        %v450 = vstv %s396
        %v451 = vadd.f32 %v448, %v450
        %v452 = vadd.f32 %v449, %v450
        %v453 = vmax.f32 %v451, 0.0
        %v454 = vmax.f32 %v452, 0.0
        %v455 = vstv %s404
        %v456 = vmul.f32 %v455, %v453
        %v457 = vmul.f32 %v455, %v454
        %v458 = vadd.f32 %v440, %v456
        %v459 = vadd.f32 %v440, %v457
        %v460 = vstv %s413
        %v461 = vmul.f32 %v460, %v453
        %v462 = vmul.f32 %v460, %v454
        %v463 = vadd.f32 %v441, %v461
        %v464 = vadd.f32 %v441, %v462
        %v465 = vstv %s381
        %v466 = vmul.f32 %v465, %v434
        %v467 = vmul.f32 %v465, %v435
        %v468 = vstv %s389
        %v469 = vmul.f32 %v468, %v438
        %v470 = vmul.f32 %v468, %v439
        %v471 = vadd.f32 %v466, %v469
        %v472 = vadd.f32 %v467, %v470
        %v473 = vstv %s397
        %v474 = vadd.f32 %v471, %v473
        %v475 = vadd.f32 %v472, %v473
        %v476 = vmax.f32 %v474, 0.0
        %v477 = vmax.f32 %v475, 0.0
        %v478 = vstv %s405
        %v479 = vmul.f32 %v478, %v476
        %v480 = vmul.f32 %v478, %v477
        %v481 = vadd.f32 %v458, %v479
        %v482 = vadd.f32 %v459, %v480
        %v483 = vstv %s415
        %v484 = vmul.f32 %v483, %v476
        %v485 = vmul.f32 %v483, %v477
        %v486 = vadd.f32 %v463, %v484
        %v487 = vadd.f32 %v464, %v485
        %v488 = vstv %s382
        %v489 = vmul.f32 %v488, %v434
        %v490 = vmul.f32 %v488, %v435
        %v491 = vstv %s390
        %v492 = vmul.f32 %v491, %v438
        %v493 = vmul.f32 %v491, %v439
        %v494 = vadd.f32 %v489, %v492
        %v495 = vadd.f32 %v490, %v493
        %v496 = vstv %s398
        %v497 = vadd.f32 %v494, %v496
        %v498 = vadd.f32 %v495, %v496
        %v499 = vmax.f32 %v497, 0.0
        %v500 = vmax.f32 %v498, 0.0
        %v501 = vstv %s406
        %v502 = vmul.f32 %v501, %v499
        %v503 = vmul.f32 %v501, %v500
        %v504 = vadd.f32 %v481, %v502
        %v505 = vadd.f32 %v482, %v503
        %v506 = vstv %s417
        %v507 = vmul.f32 %v506, %v499
        %v508 = vmul.f32 %v506, %v500
        %v509 = vadd.f32 %v486, %v507
        %v510 = vadd.f32 %v487, %v508
        %v511 = vstv %s383
        %v512 = vmul.f32 %v511, %v434
        %v513 = vmul.f32 %v511, %v435
        %v514 = vstv %s391
        %v515 = vmul.f32 %v514, %v438
        %v516 = vmul.f32 %v514, %v439
        %v517 = vadd.f32 %v512, %v515
        %v518 = vadd.f32 %v513, %v516
        %v519 = vstv %s399
        %v520 = vadd.f32 %v517, %v519
        %v521 = vadd.f32 %v518, %v519
        %v522 = vmax.f32 %v520, 0.0
        %v523 = vmax.f32 %v521, 0.0
        %v524 = vstv %s407
        %v525 = vmul.f32 %v524, %v522
        %v526 = vmul.f32 %v524, %v523
        %v527 = vadd.f32 %v504, %v525
        %v528 = vadd.f32 %v505, %v526
        %v529 = vstv %s419
        %v530 = vmul.f32 %v529, %v522
        %v531 = vmul.f32 %v529, %v523
        %v532 = vadd.f32 %v509, %v530
        %v533 = vadd.f32 %v510, %v531
        %v534 = vstv %s384
        %v535 = vmul.f32 %v534, %v434
        %v536 = vmul.f32 %v534, %v435
        %v537 = vstv %s392
        %v538 = vmul.f32 %v537, %v438
        %v539 = vmul.f32 %v537, %v439
        %v540 = vadd.f32 %v535, %v538
        %v541 = vadd.f32 %v536, %v539
        %v542 = vstv %s400
        %v543 = vadd.f32 %v540, %v542
        %v544 = vadd.f32 %v541, %v542
        %v545 = vmax.f32 %v543, 0.0
        %v546 = vmax.f32 %v544, 0.0
        %v547 = vstv %s408
        %v548 = vmul.f32 %v547, %v545
        %v549 = vmul.f32 %v547, %v546
        %v550 = vadd.f32 %v527, %v548
        %v551 = vadd.f32 %v528, %v549
        %v552 = vstv %s421
        %v553 = vmul.f32 %v552, %v545
        %v554 = vmul.f32 %v552, %v546
        %v555 = vadd.f32 %v532, %v553
        %v556 = vadd.f32 %v533, %v554
        %v557 = vstv %s385
        %v558 = vmul.f32 %v557, %v434
        %v559 = vmul.f32 %v557, %v435
        %v560 = vstv %s393
        %v561 = vmul.f32 %v560, %v438
        %v562 = vmul.f32 %v560, %v439
        %v563 = vadd.f32 %v558, %v561
        %v564 = vadd.f32 %v559, %v562
        %v565 = vstv %s401
        %v566 = vadd.f32 %v563, %v565
        %v567 = vadd.f32 %v564, %v565
        %v568 = vmax.f32 %v566, 0.0
        %v569 = vmax.f32 %v567, 0.0
        %v570 = vstv %s409
        %v571 = vmul.f32 %v570, %v568
        %v572 = vmul.f32 %v570, %v569
        %v573 = vadd.f32 %v550, %v571
        %v574 = vadd.f32 %v551, %v572
        %v575 = vstv %s423
        %v576 = vmul.f32 %v575, %v568
        %v577 = vmul.f32 %v575, %v569
        %v578 = vadd.f32 %v555, %v576
        %v579 = vadd.f32 %v556, %v577
        %v580 = vstv %s386
        %v581 = vmul.f32 %v580, %v434
        %v582 = vmul.f32 %v580, %v435
        %v583 = vstv %s394
        %v584 = vmul.f32 %v583, %v438
        %v585 = vmul.f32 %v583, %v439
        %v586 = vadd.f32 %v581, %v584
        %v587 = vadd.f32 %v582, %v585
        %v588 = vstv %s402
        %v589 = vadd.f32 %v586, %v588
        %v590 = vadd.f32 %v587, %v588
        %v591 = vmax.f32 %v589, 0.0
        %v592 = vmax.f32 %v590, 0.0
        %v593 = vstv %s410
        %v594 = vmul.f32 %v593, %v591
        %v595 = vmul.f32 %v593, %v592
        %v596 = vadd.f32 %v573, %v594
        %v597 = vadd.f32 %v574, %v595
        %v598 = vstv %s425
        %v599 = vmul.f32 %v598, %v591
        %v600 = vmul.f32 %v598, %v592
        %v601 = vadd.f32 %v578, %v599
        %v602 = vadd.f32 %v579, %v600
        %v603 = vstv %s387
        %v604 = vmul.f32 %v603, %v434
        %v605 = vmul.f32 %v603, %v435
        %v606 = vstv %s395
        %v607 = vmul.f32 %v606, %v438
        %v608 = vmul.f32 %v606, %v439
        %v609 = vadd.f32 %v604, %v607
        %v610 = vadd.f32 %v605, %v608
        %v611 = vstv %s403
        %v612 = vadd.f32 %v609, %v611
        %v613 = vadd.f32 %v610, %v611
        %v614 = vmax.f32 %v612, 0.0
        %v615 = vmax.f32 %v613, 0.0
        %v616 = vstv %s411
        %v617 = vmul.f32 %v616, %v614
        %v618 = vmul.f32 %v616, %v615
        %v619 = vadd.f32 %v596, %v617
        %v620 = vadd.f32 %v597, %v618
        %v621 = vstv %s427
        %v622 = vmul.f32 %v621, %v614
        %v623 = vmul.f32 %v621, %v615
        %v624 = vadd.f32 %v601, %v622
        %v625 = vadd.f32 %v602, %v623
        %v626 = vmul.f32 %v619, 1.442695
        %v627 = vpow.pop %v626
        %v628 = vmul.f32 %v620, 1.442695
        %v629 = vpow.pop %v628
        %v630 = vadd.f32 %v627, 1.0
        %v631 = vadd.f32 %v629, 1.0
        %v632 = vtanh.pop %v624
        %v633 = vtanh.pop %v625
        %v634 = vadd.f32 %v632, 1.0
        %v635 = vadd.f32 %v633, 1.0
        %v636 = vstv %s432
        %v637 = vmul.f32 %v636, %v634
        %v638 = vmul.f32 %v636, %v635
        %v639 = vmul.f32 %v630, %v637
        %v640 = vmul.f32 %v631, %v638
        %v641 = vstv %s433
        %v642 = vadd.f32 %v639, %v641
        %v643 = vadd.f32 %v640, %v641
        %644 = vst [vmem:[%s377] sm:$0xff] %v642
        %645 = vst [vmem:[%s377 + $0x8] sm:$0xff] %v643
        %s646 = scalar_lea.vmem %s325, 16 [#allocation4]
        %v647 = vld [vmem:[%s646] sm:$0xff]
        %v648 = vld [vmem:[%s646 + $0x8] sm:$0xff]
        %s649 = sadd.s32 16, 32
        %s650 = scalar_lea.vmem %s325, %s649 [#allocation4]
        %v651 = vld [vmem:[%s650] sm:$0xff]
        %v652 = vld [vmem:[%s650 + $0x8] sm:$0xff]
        %v653 = vmul.f32 %v442, %v647
        %v654 = vmul.f32 %v442, %v648
        %v655 = vmul.f32 %v445, %v651
        %v656 = vmul.f32 %v445, %v652
        %v657 = vadd.f32 %v653, %v655
        %v658 = vadd.f32 %v654, %v656
        %v659 = vadd.f32 %v657, %v450
        %v660 = vadd.f32 %v658, %v450
        %v661 = vmax.f32 %v659, 0.0
        %v662 = vmax.f32 %v660, 0.0
        %v663 = vmul.f32 %v455, %v661
        %v664 = vmul.f32 %v455, %v662
        %v665 = vadd.f32 %v440, %v663
        %v666 = vadd.f32 %v440, %v664
        %v667 = vmul.f32 %v460, %v661
        %v668 = vmul.f32 %v460, %v662
        %v669 = vadd.f32 %v441, %v667
        %v670 = vadd.f32 %v441, %v668
        %v671 = vmul.f32 %v465, %v647
        %v672 = vmul.f32 %v465, %v648
        %v673 = vmul.f32 %v468, %v651
        %v674 = vmul.f32 %v468, %v652
        %v675 = vadd.f32 %v671, %v673
        %v676 = vadd.f32 %v672, %v674
        %v677 = vadd.f32 %v675, %v473
        %v678 = vadd.f32 %v676, %v473
        %v679 = vmax.f32 %v677, 0.0
        %v680 = vmax.f32 %v678, 0.0
        %v681 = vmul.f32 %v478, %v679
        %v682 = vmul.f32 %v478, %v680
        %v683 = vadd.f32 %v665, %v681
        %v684 = vadd.f32 %v666, %v682
        %v685 = vmul.f32 %v483, %v679
        %v686 = vmul.f32 %v483, %v680
        %v687 = vadd.f32 %v669, %v685
        %v688 = vadd.f32 %v670, %v686
        %v689 = vmul.f32 %v488, %v647
        %v690 = vmul.f32 %v488, %v648
        %v691 = vmul.f32 %v491, %v651
        %v692 = vmul.f32 %v491, %v652
        %v693 = vadd.f32 %v689, %v691
        %v694 = vadd.f32 %v690, %v692
        %v695 = vadd.f32 %v693, %v496
        %v696 = vadd.f32 %v694, %v496
        %v697 = vmax.f32 %v695, 0.0
        %v698 = vmax.f32 %v696, 0.0
        %v699 = vmul.f32 %v501, %v697
        %v700 = vmul.f32 %v501, %v698
        %v701 = vadd.f32 %v683, %v699
        %v702 = vadd.f32 %v684, %v700
        %v703 = vmul.f32 %v506, %v697
        %v704 = vmul.f32 %v506, %v698
        %v705 = vadd.f32 %v687, %v703
        %v706 = vadd.f32 %v688, %v704
        %v707 = vmul.f32 %v511, %v647
        %v708 = vmul.f32 %v511, %v648
        %v709 = vmul.f32 %v514, %v651
        %v710 = vmul.f32 %v514, %v652
        %v711 = vadd.f32 %v707, %v709
        %v712 = vadd.f32 %v708, %v710
        %v713 = vadd.f32 %v711, %v519
        %v714 = vadd.f32 %v712, %v519
        %v715 = vmax.f32 %v713, 0.0
        %v716 = vmax.f32 %v714, 0.0
        %v717 = vmul.f32 %v524, %v715
        %v718 = vmul.f32 %v524, %v716
        %v719 = vadd.f32 %v701, %v717
        %v720 = vadd.f32 %v702, %v718
        %v721 = vmul.f32 %v529, %v715
        %v722 = vmul.f32 %v529, %v716
        %v723 = vadd.f32 %v705, %v721
        %v724 = vadd.f32 %v706, %v722
        %v725 = vmul.f32 %v534, %v647
        %v726 = vmul.f32 %v534, %v648
        %v727 = vmul.f32 %v537, %v651
        %v728 = vmul.f32 %v537, %v652
        %v729 = vadd.f32 %v725, %v727
        %v730 = vadd.f32 %v726, %v728
        %v731 = vadd.f32 %v729, %v542
        %v732 = vadd.f32 %v730, %v542
        %v733 = vmax.f32 %v731, 0.0
        %v734 = vmax.f32 %v732, 0.0
        %v735 = vmul.f32 %v547, %v733
        %v736 = vmul.f32 %v547, %v734
        %v737 = vadd.f32 %v719, %v735
        %v738 = vadd.f32 %v720, %v736
        %v739 = vmul.f32 %v552, %v733
        %v740 = vmul.f32 %v552, %v734
        %v741 = vadd.f32 %v723, %v739
        %v742 = vadd.f32 %v724, %v740
        %v743 = vmul.f32 %v557, %v647
        %v744 = vmul.f32 %v557, %v648
        %v745 = vmul.f32 %v560, %v651
        %v746 = vmul.f32 %v560, %v652
        %v747 = vadd.f32 %v743, %v745
        %v748 = vadd.f32 %v744, %v746
        %v749 = vadd.f32 %v747, %v565
        %v750 = vadd.f32 %v748, %v565
        %v751 = vmax.f32 %v749, 0.0
        %v752 = vmax.f32 %v750, 0.0
        %v753 = vmul.f32 %v570, %v751
        %v754 = vmul.f32 %v570, %v752
        %v755 = vadd.f32 %v737, %v753
        %v756 = vadd.f32 %v738, %v754
        %v757 = vmul.f32 %v575, %v751
        %v758 = vmul.f32 %v575, %v752
        %v759 = vadd.f32 %v741, %v757
        %v760 = vadd.f32 %v742, %v758
        %v761 = vmul.f32 %v580, %v647
        %v762 = vmul.f32 %v580, %v648
        %v763 = vmul.f32 %v583, %v651
        %v764 = vmul.f32 %v583, %v652
        %v765 = vadd.f32 %v761, %v763
        %v766 = vadd.f32 %v762, %v764
        %v767 = vadd.f32 %v765, %v588
        %v768 = vadd.f32 %v766, %v588
        %v769 = vmax.f32 %v767, 0.0
        %v770 = vmax.f32 %v768, 0.0
        %v771 = vmul.f32 %v593, %v769
        %v772 = vmul.f32 %v593, %v770
        %v773 = vadd.f32 %v755, %v771
        %v774 = vadd.f32 %v756, %v772
        %v775 = vmul.f32 %v598, %v769
        %v776 = vmul.f32 %v598, %v770
        %v777 = vadd.f32 %v759, %v775
        %v778 = vadd.f32 %v760, %v776
        %v779 = vmul.f32 %v603, %v647
        %v780 = vmul.f32 %v603, %v648
        %v781 = vmul.f32 %v606, %v651
        %v782 = vmul.f32 %v606, %v652
        %v783 = vadd.f32 %v779, %v781
        %v784 = vadd.f32 %v780, %v782
        %v785 = vadd.f32 %v783, %v611
        %v786 = vadd.f32 %v784, %v611
        %v787 = vmax.f32 %v785, 0.0
        %v788 = vmax.f32 %v786, 0.0
        %v789 = vmul.f32 %v616, %v787
        %v790 = vmul.f32 %v616, %v788
        %v791 = vadd.f32 %v773, %v789
        %v792 = vadd.f32 %v774, %v790
        %v793 = vmul.f32 %v621, %v787
        %v794 = vmul.f32 %v621, %v788
        %v795 = vadd.f32 %v777, %v793
        %v796 = vadd.f32 %v778, %v794
        %v797 = vmul.f32 %v791, 1.442695
        %v798 = vpow.pop %v797
        %v799 = vmul.f32 %v792, 1.442695
        %v800 = vpow.pop %v799
        %v801 = vadd.f32 %v798, 1.0
        %v802 = vadd.f32 %v800, 1.0
        %v803 = vtanh.pop %v795
        %v804 = vtanh.pop %v796
        %v805 = vadd.f32 %v803, 1.0
        %v806 = vadd.f32 %v804, 1.0
        %v807 = vmul.f32 %v636, %v805
        %v808 = vmul.f32 %v636, %v806
        %v809 = vmul.f32 %v801, %v807
        %v810 = vmul.f32 %v802, %v808
        %v811 = vadd.f32 %v809, %v641
        %v812 = vadd.f32 %v810, %v641
        %s813 = scalar_lea.vmem %s377, 16 [#allocation14]
        %814 = vst [vmem:[%s813] sm:$0xff] %v811
        %815 = vst [vmem:[%s813 + $0x8] sm:$0xff] %v812
        %s816 = sand.u32 %s189, 1
        %s817 = scalar_lea.sflag [#allocation6], %s816
        %s818 = sand.u32 %s189, 1
        %s819 = smul.addr %s818, 32
        %s820 = scalar_lea.vmem [#allocation14], %s819
        // Predicated region
        $region69: #{tpu_custom_call.1} parent=47 // pred_check
          %p821 = pneg %p199
        $region70: #{tpu_custom_call.1} parent=47 // pred_check_branch
          %823 = sbr.rel (%p821) target = $region72
        $region71: #{tpu_custom_call.1} parent=47 // pred_region
          %s824 = smul.u32 4, %s29
          %826 = vsyncadd %s817, 0
          %s827 = smul.addr %s824, 8
          %s828 = scalar_lea.hbm %s7, %s827
          %s829 = sshll.u32 %s820, 4
          %s830 = int_to_ptr.vmem [resolvable:$true] %s829
          %s831 = sshll.u32 %s828, 4
          %s832 = int_to_ptr.hbm [resolvable:$true] %s831
          %837 = dma.vmem_to_hbm [thread:$0]  %s830, 512, %s832, %s817, 128, 128, 8
        $region72: #{tpu_custom_call.1} parent=47 // pred_fallthru
          _
      $region48: #{tpu_custom_call.1} parent=5 // pred_fallthru
        _
      %p838 = scmp.le.s32.totalorder 2, %s24
      // Predicated region
      $region73: #{tpu_custom_call.1} parent=5 // pred_check
        %p839 = pneg %p838
      $region74: #{tpu_custom_call.1} parent=5 // pred_check_branch
        %841 = sbr.rel (%p839) target = $region76
      $region75: #{tpu_custom_call.1} parent=5 // pred_region
        %s842 = ssub.s32 %s24, 2
        // Predicated region
        $region77: #{tpu_custom_call.1} parent=75 // pred_check
          %p843 = pneg %p205
        $region78: #{tpu_custom_call.1} parent=75 // pred_check_branch
          %845 = sbr.rel (%p843) target = $region80
        $region79: #{tpu_custom_call.1} parent=75 // pred_region
          %s846 = sand.u32 %s190, 1
          %s847 = scalar_lea.sflag [#allocation6], %s846
          %s848 = sand.u32 %s190, 1
          %s849 = smul.addr %s848, 32
          %s850 = scalar_lea.vmem [#allocation14], %s849
          %852 = dma.done %s847, 512
        $region80: #{tpu_custom_call.1} parent=75 // pred_fallthru
          _
      $region76: #{tpu_custom_call.1} parent=5 // pred_fallthru
        _
    $region6: #{tpu_custom_call.1} parent=1 // loop_footer
      %s28 = sadd.s32 1, %s24
    $region7: #{tpu_custom_call.1} parent=1 // loop_footer_branch
      %23 = sbr.rel target = $region3
    $region8: #{tpu_custom_call.1} parent=1 // loop_exit
      _
    %853 = vsyncpa [#allocation5], 1
    %s854 = scalar_lea.sflag [#allocation5], 1
    %855 = vsyncpa %s854, 1
    %856 = vsyncpa [#allocation6], 1
    %s857 = scalar_lea.sflag [#allocation6], 1
    %858 = vsyncpa %s857, 1
    %859 = vsyncpa [#allocation7], 1
    %s860 = scalar_lea.sflag [#allocation7], 1
    %861 = vsyncpa %s860, 1
    %862 = vsyncpa [#allocation10], 1
    %863 = vsyncpa [#allocation13], 1

</llo_original>
